<compile_context>
chip_gen: v7x
topology: tpu7x:2x2x1
jax: 0.10.0
libtpu: 0.0.40
codegen_flags: <defaults>
</compile_context>

<pallas_src>
import functools

import jax
import jax.numpy as jnp
from jax.experimental import pallas as pl
from jax.experimental.pallas import tpu as pltpu

NEG_SLOPE = 0.2  # DGL GATConv default negative_slope


# ----------------------------------------------------------------------------
# Fused projection kernel: proj = x @ W_ext  (one lane-filling MXU matmul for
# all heads, with attn_l / attn_r folded in as extra columns).
# ----------------------------------------------------------------------------
def _proj_kernel(x_ref, w_ref, o_ref):
    o_ref[...] = jnp.dot(x_ref[...], w_ref[...],
                         preferred_element_type=jnp.float32)


def _fused_projection(x, w_ext, *, tile_rows=256):
    Ns, Fin = x.shape
    C = w_ext.shape[1]
    if Ns % tile_rows != 0:
        tile_rows = Ns
    return pl.pallas_call(
        _proj_kernel,
        out_shape=jax.ShapeDtypeStruct((Ns, C), jnp.float32),
        grid_spec=pltpu.PrefetchScalarGridSpec(
            num_scalar_prefetch=0,
            grid=(Ns // tile_rows,),
            in_specs=[
                pl.BlockSpec((tile_rows, Fin), lambda i: (i, 0)),
                pl.BlockSpec((Fin, C), lambda i: (0, 0)),
            ],
            out_specs=pl.BlockSpec((tile_rows, C), lambda i: (i, 0)),
        ),
        compiler_params=pltpu.CompilerParams(
            dimension_semantics=("parallel",)),
    )(x, w_ext)


# ----------------------------------------------------------------------------
# Attention / aggregation kernel.  Grid = (dst tiles [parallel],
# src tiles [arbitrary, online-softmax reduction]).
# ----------------------------------------------------------------------------
def _gat_attn_kernel(feat_ref, el_ref, er_ref, adj_ref, bias_ref, out_ref,
                     m_sc, l_sc, acc_sc, *, H, D, last_layer):
    # feat_ref: (tile_ns, H*D)     projected source features for this src tile
    # el_ref  : (H, tile_ns)       source logits, lane layout
    # er_ref  : (tile_nd, H)       destination logits for this dst tile
    # adj_ref : (tile_nd, tile_ns) int8, adj[v, u] = 1 iff edge u -> v
    # bias_ref: (1, H*D)  or (1, D) pre-averaged bias when last_layer
    # out_ref : (tile_nd, H*D) or (tile_nd, D)
    # m_sc/l_sc: (H, tile_nd, 1)   running max / softmax denominator
    # acc_sc   : (H, tile_nd, D)   running weighted feature sum
    j = pl.program_id(1)
    nj = pl.num_programs(1)

    @pl.when(j == 0)
    def _init():
        m_sc[...] = jnp.full(m_sc.shape, -1e30, dtype=jnp.float32)
        l_sc[...] = jnp.zeros(l_sc.shape, dtype=jnp.float32)
        acc_sc[...] = jnp.zeros(acc_sc.shape, dtype=jnp.float32)

    adj_f = adj_ref[...].astype(jnp.float32)   # 0/1 mask, shared by all heads
    er_all = er_ref[...]                       # (tile_nd, H)
    el_all = el_ref[...]                       # (H, tile_ns)

    for h in range(H):                         # static unroll over heads
        er_h = er_all[:, h:h + 1]              # (tile_nd, 1)
        el_h = el_all[h:h + 1, :]              # (1, tile_ns)
        feat_h = feat_ref[:, h * D:(h + 1) * D]            # (tile_ns, D)

        e = er_h + el_h                        # (tile_nd, tile_ns)
        e = jnp.maximum(e, NEG_SLOPE * e)      # leaky relu (single max)

        m_prev = m_sc[h, :, :]                 # (tile_nd, 1)
        m_new = jnp.maximum(m_prev, jnp.max(e, axis=-1, keepdims=True))
        corr = jnp.exp(m_prev - m_new)
        # Multiplicative masking after exp: the shared shift m_new cancels in
        # the final normalization, so no additive -1e30 bias is needed and
        # empty (dst-row x src-tile) blocks contribute exactly zero.
        p = jnp.exp(e - m_new) * adj_f

        l_sc[h, :, :] = corr * l_sc[h, :, :] + jnp.sum(p, axis=-1,
                                                       keepdims=True)
        acc_sc[h, :, :] = corr * acc_sc[h, :, :] + jnp.dot(
            p, feat_h, preferred_element_type=jnp.float32)
        m_sc[h, :, :] = m_new

    @pl.when(j == nj - 1)
    def _finalize():
        # Normalize after the aggregation matmul: (tile_nd,1) divide +
        # (tile_nd,D) multiply per head instead of a (tile_nd,Ns) divide.
        # Rows are guaranteed non-empty (self-loops), so l > 0.
        if last_layer:
            total = None
            for h in range(H):
                inv = 1.0 / l_sc[h, :, :]
                r = acc_sc[h, :, :] * inv
                total = r if total is None else total + r
            out_ref[...] = total * (1.0 / H) + bias_ref[...]
        else:
            for h in range(H):
                inv = 1.0 / l_sc[h, :, :]
                out_ref[:, h * D:(h + 1) * D] = (
                    acc_sc[h, :, :] * inv + bias_ref[:, h * D:(h + 1) * D])


def gat_conv_pallas(x, adj, W, attn_l, attn_r, bias, *, last_layer,
                    tile_nd=None, tile_ns=None):
    H, Fin, D = W.shape
    Nd, Ns = adj.shape
    assert x.shape == (Ns, Fin)
    assert Nd == Ns, "square adjacency expected (see TODO on bipartite MFGs)"

    if tile_nd is None:
        tile_nd = Nd if Nd <= 256 else 256
    if tile_ns is None:
        tile_ns = Ns if Ns <= 512 else 512
    assert Nd % tile_nd == 0 and (tile_nd == Nd or tile_nd % 32 == 0)
    assert Ns % tile_ns == 0 and (tile_ns == Ns or tile_ns % 128 == 0)

    # Grouped fused projection matrix:
    #   columns [0, H*D)        -> per-head features  (head h at h*D .. h*D+D)
    #   columns [H*D, H*D+H)    -> el_h = (x W_h) . attn_l_h
    #   columns [H*D+H, H*D+2H) -> er_h = (x W_h) . attn_r_h
    w_feat = jnp.transpose(W, (1, 0, 2)).reshape(Fin, H * D)
    wl = jnp.einsum('hfd,hod->fh', W, attn_l)            # (Fin, H)
    wr = jnp.einsum('hfd,hod->fh', W, attn_r)            # (Fin, H)
    w_ext = jnp.concatenate([w_feat, wl, wr], axis=1)    # (Fin, H*D + 2H)

    proj = _fused_projection(x, w_ext)                   # (Ns, H*D + 2H)
    feat = proj[:, :H * D]                               # (Ns, H*D)
    el_t = jnp.transpose(proj[:, H * D:H * D + H])       # (H, Ns)
    er = proj[:, H * D + H:]                             # (Nd, H) (dst == src)

    adj_i8 = adj.astype(jnp.int8)                        # 4x less DMA than f32

    if last_layer:
        out_cols = D
        bias_in = bias.reshape(H, D).mean(axis=0, keepdims=True)  # (1, D)
    else:
        out_cols = H * D
        bias_in = bias.reshape(1, H * D)

    kernel = functools.partial(_gat_attn_kernel, H=H, D=D,
                               last_layer=last_layer)

    out = pl.pallas_call(
        kernel,
        out_shape=jax.ShapeDtypeStruct((Nd, out_cols), jnp.float32),
        grid_spec=pltpu.PrefetchScalarGridSpec(
            num_scalar_prefetch=0,
            grid=(Nd // tile_nd, Ns // tile_ns),
            in_specs=[
                pl.BlockSpec((tile_ns, H * D), lambda i, j: (j, 0)),   # feat
                pl.BlockSpec((H, tile_ns), lambda i, j: (0, j)),       # el^T
                pl.BlockSpec((tile_nd, H), lambda i, j: (i, 0)),       # er
                pl.BlockSpec((tile_nd, tile_ns), lambda i, j: (i, j)),  # adj
                pl.BlockSpec((1, out_cols), lambda i, j: (0, 0)),      # bias
            ],
            out_specs=pl.BlockSpec((tile_nd, out_cols), lambda i, j: (i, 0)),
            scratch_shapes=[
                pltpu.VMEM((H, tile_nd, 1), jnp.float32),  # running max
                pltpu.VMEM((H, tile_nd, 1), jnp.float32),  # running denom
                pltpu.VMEM((H, tile_nd, D), jnp.float32),  # running acc
            ],
        ),
        compiler_params=pltpu.CompilerParams(
            # dst tiles independent (megacore / v7x 2-TC); src axis is the
            # online-softmax reduction, kept sequential and last.
            dimension_semantics=("parallel", "arbitrary"),
            vmem_limit_bytes=32 * 1024 * 1024,
        ),
    )(feat, el_t, er, adj_i8, bias_in)
    return out


# ----------------------------------------------------------------------------
# Pure-JAX reference of DGL GATConv + SimpleGATConv wrapper (eval mode).
# ----------------------------------------------------------------------------
def gat_conv_ref(x, adj, W, attn_l, attn_r, bias, *, last_layer):
    H, Fin, D = W.shape
    feat = jnp.einsum('nf,hfd->nhd', x, W)                      # (N, H, D)
    el = jnp.sum(feat * attn_l.reshape(1, H, D), axis=-1)       # (N, H)
    er = jnp.sum(feat * attn_r.reshape(1, H, D), axis=-1)       # (N, H)
    e = er[:, None, :] + el[None, :, :]                         # (Nd, Ns, H)
    e = jnp.where(e > 0, e, NEG_SLOPE * e)
    mask = (adj > 0)[:, :, None]
    e = jnp.where(mask, e, -jnp.inf)
    a = jax.nn.softmax(e, axis=1)
    a = jnp.where(mask, a, 0.0)
    out = jnp.einsum('vuh,uhd->vhd', a, feat) + bias.reshape(1, H, D)
    if last_layer:
        return out.mean(axis=1)
    return out.reshape(out.shape[0], H * D)


if __name__ == "__main__":
    N, FIN, D, H = 256, 16, 8, 4     # nodes, in_feats, out_feats/head, heads
    TILE_ND, TILE_NS = 128, 128      # 2x2 grid: exercises both tiling axes

    key = jax.random.PRNGKey(0)
    kx, kw, kal, kar, kb, kadj = jax.random.split(key, 6)

    x = jax.random.normal(kx, (N, FIN), dtype=jnp.float32)
    W = jax.random.normal(kw, (H, FIN, D), dtype=jnp.float32) * 0.2
    attn_l = jax.random.normal(kal, (H, 1, D), dtype=jnp.float32) * 0.2
    attn_r = jax.random.normal(kar, (H, 1, D), dtype=jnp.float32) * 0.2
    bias = jax.random.normal(kb, (H, 1, D), dtype=jnp.float32) * 0.1

    # Deterministic sparse-ish graph with self-loops (no zero in-degree).
    rand_adj = (jax.random.uniform(kadj, (N, N)) < 0.1).astype(jnp.float32)
    adj = jnp.maximum(rand_adj, jnp.eye(N, dtype=jnp.float32))

    # Hidden-layer mode: flatten(start_dim=1) -> (N, H*D)
    out_flat = jax.block_until_ready(
        gat_conv_pallas(x, adj, W, attn_l, attn_r, bias,
                        last_layer=False, tile_nd=TILE_ND, tile_ns=TILE_NS))
    ref_flat = gat_conv_ref(x, adj, W, attn_l, attn_r, bias, last_layer=False)
    assert out_flat.shape == (N, H * D)
    err = float(jnp.max(jnp.abs(out_flat - ref_flat)))
    assert jnp.allclose(out_flat, ref_flat, atol=1e-4, rtol=1e-4), err

    # Last-layer mode: mean(dim=1) -> (N, D)
    out_mean = jax.block_until_ready(
        gat_conv_pallas(x, adj, W, attn_l, attn_r, bias,
                        last_layer=True, tile_nd=TILE_ND, tile_ns=TILE_NS))
    ref_mean = gat_conv_ref(x, adj, W, attn_l, attn_r, bias, last_layer=True)
    assert out_mean.shape == (N, D)
    err = float(jnp.max(jnp.abs(out_mean - ref_mean)))
    assert jnp.allclose(out_mean, ref_mean, atol=1e-4, rtol=1e-4), err

    print("KERNEL_OK")
</pallas_src>

<mosaic_0001>
module attributes {stable_mosaic.version = 11 : i64} {
  func.func @_proj_kernel(%arg0: i32, %arg1: memref<256x16xf32, #tpu.memory_space<vmem>>, %arg2: memref<16x40xf32, #tpu.memory_space<vmem>>, %arg3: memref<256x40xf32, #tpu.memory_space<vmem>>) attributes {dimension_semantics = [#tpu.dimension_semantics<parallel>], iteration_bounds = array<i64: 1>, scalar_prefetch = 0 : i64, scratch_operands = 0 : i64, tpu.core_type = #tpu.core_type<tc>, window_params = [{transform_indices = @transform_0, window_bounds = array<i64: 256, 16>}, {pipeline_mode = #tpu.pipeline_mode<synchronous>, transform_indices = @transform_1, window_bounds = array<i64: 16, 40>}, {transform_indices = @transform_2, window_bounds = array<i64: 256, 40>}]} {
    %c0 = arith.constant 0 : index
    %c0_0 = arith.constant 0 : index
    %0 = vector.load %arg1[%c0, %c0_0] : memref<256x16xf32, #tpu.memory_space<vmem>>, vector<256x16xf32>
    %c0_1 = arith.constant 0 : index
    %c0_2 = arith.constant 0 : index
    %1 = vector.load %arg2[%c0_1, %c0_2] : memref<16x40xf32, #tpu.memory_space<vmem>>, vector<16x40xf32>
    %cst = arith.constant dense<0.000000e+00> : vector<256x40xf32>
    %2 = tpu.matmul %0, %1, %cst {dimension_numbers = #tpu.dot_dimension_numbers<[1], [0], [0], [1], [0, 0, 1, 1], [], []>} : vector<256x16xf32>, vector<16x40xf32>, vector<256x40xf32> -> vector<256x40xf32>
    %c0_3 = arith.constant 0 : index
    %c0_4 = arith.constant 0 : index
    %3 = vector.load %arg3[%c0_3, %c0_4] : memref<256x40xf32, #tpu.memory_space<vmem>>, vector<256x40xf32>
    tpu.vector_store %arg3[%c0_3, %c0_4], %2 {strides = array<i32>} : memref<256x40xf32, #tpu.memory_space<vmem>>, vector<256x40xf32>,
    return
  }
  func.func @transform_0(%arg0: i32) -> (i32, i32) {
    %c0_i32 = arith.constant 0 : i32
    %c0_i32_0 = arith.constant 0 : i32
    return %arg0, %c0_i32 : i32, i32
  }
  func.func @transform_1(%arg0: i32) -> (i32, i32) {
    %c0_i32 = arith.constant 0 : i32
    %c0_i32_0 = arith.constant 0 : i32
    %c0_i32_1 = arith.constant 0 : i32
    return %c0_i32, %c0_i32_0 : i32, i32
  }
  func.func @transform_2(%arg0: i32) -> (i32, i32) {
    %c0_i32 = arith.constant 0 : i32
    %c0_i32_0 = arith.constant 0 : i32
    return %arg0, %c0_i32 : i32, i32
  }
}

</mosaic_0001>

<llo_original>
// kernel: tpu_custom_call.1
$region0: #{tpu_custom_call.1}
  #allocation0 [shape = 'u32[]', space=smem, size = 0x4, offset = 0x4, fixed_abs, tag = 'smem constant byte address 0x4 - core index']
  #allocation1 [shape = 'u32[144,128]{1,0:T(1,128)}', space=vmem, size = 0x12000, scoped, tag = 'internal scratch']
  %s0 = inlined_call_operand.vmem [shape: f32[256,16], index: 0, kind: input, shape index: {}]
  %s1 = inlined_call_operand.vmem [shape: f32[16,40], index: 1, kind: input, shape index: {}]
  %s2 = inlined_call_operand.vmem [shape: f32[256,40], index: 2, kind: output, shape index: {}]
  %s3 = sld [smem:[#allocation0]]
  $region18: #{tpu_custom_call.1} parent=0
    _
  %s5 = ssub.s32 1, %s3
  %s6 = scalar_select 0, %s5, %s3
  // Predicated region
  $region2: #{tpu_custom_call.1} parent=0 // pred_check
    _
  $region3: #{tpu_custom_call.1} parent=0 // pred_check_branch
    %8 = sbr.rel (0) target = $region5
  $region4: #{tpu_custom_call.1} parent=0 // pred_region
    _
  $region5: #{tpu_custom_call.1} parent=0 // pred_fallthru
    _
  // Predicated region
  $region6: #{tpu_custom_call.1} parent=0 // pred_check
    _
  $region7: #{tpu_custom_call.1} parent=0 // pred_check_branch
    %10 = sbr.rel (0) target = $region9
  $region8: #{tpu_custom_call.1} parent=0 // pred_region
    _
  $region9: #{tpu_custom_call.1} parent=0 // pred_fallthru
    _
  %v11 = vld [vmem:[%s0] sm:$0xff]
  %v12 = vld [vmem:[%s0 + $0x8] sm:$0xff]
  %v13 = vld [vmem:[%s0 + $0x10] sm:$0xff]
  %v14 = vld [vmem:[%s0 + $0x18] sm:$0xff]
  %v15 = vld [vmem:[%s0 + $0x20] sm:$0xff]
  %v16 = vld [vmem:[%s0 + $0x28] sm:$0xff]
  %v17 = vld [vmem:[%s0 + $0x30] sm:$0xff]
  %v18 = vld [vmem:[%s0 + $0x38] sm:$0xff]
  %v19 = vld [vmem:[%s0 + $0x40] sm:$0xff]
  %v20 = vld [vmem:[%s0 + $0x48] sm:$0xff]
  %v21 = vld [vmem:[%s0 + $0x50] sm:$0xff]
  %v22 = vld [vmem:[%s0 + $0x58] sm:$0xff]
  %v23 = vld [vmem:[%s0 + $0x60] sm:$0xff]
  %v24 = vld [vmem:[%s0 + $0x68] sm:$0xff]
  %v25 = vld [vmem:[%s0 + $0x70] sm:$0xff]
  %v26 = vld [vmem:[%s0 + $0x78] sm:$0xff]
  %v27 = vld [vmem:[%s0 + $0x80] sm:$0xff]
  %v28 = vld [vmem:[%s0 + $0x88] sm:$0xff]
  %v29 = vld [vmem:[%s0 + $0x90] sm:$0xff]
  %v30 = vld [vmem:[%s0 + $0x98] sm:$0xff]
  %v31 = vld [vmem:[%s0 + $0xa0] sm:$0xff]
  %v32 = vld [vmem:[%s0 + $0xa8] sm:$0xff]
  %v33 = vld [vmem:[%s0 + $0xb0] sm:$0xff]
  %v34 = vld [vmem:[%s0 + $0xb8] sm:$0xff]
  %v35 = vld [vmem:[%s0 + $0xc0] sm:$0xff]
  %v36 = vld [vmem:[%s0 + $0xc8] sm:$0xff]
  %v37 = vld [vmem:[%s0 + $0xd0] sm:$0xff]
  %v38 = vld [vmem:[%s0 + $0xd8] sm:$0xff]
  %v39 = vld [vmem:[%s0 + $0xe0] sm:$0xff]
  %v40 = vld [vmem:[%s0 + $0xe8] sm:$0xff]
  %v41 = vld [vmem:[%s0 + $0xf0] sm:$0xff]
  %v42 = vld [vmem:[%s0 + $0xf8] sm:$0xff]
  %v43 = vld [vmem:[%s1] sm:$0xff]
  %v44 = vld [vmem:[%s1 + $0x8] sm:$0xff]
  %vm45 = vcmask 130048
  %v47 = vsel %vm45, %v11, 0
  %v50 = vsel %vm45, %v12, 0
  %v53 = vsel %vm45, %v13, 0
  %v56 = vsel %vm45, %v14, 0
  %v59 = vsel %vm45, %v15, 0
  %v62 = vsel %vm45, %v16, 0
  %v65 = vsel %vm45, %v17, 0
  %v68 = vsel %vm45, %v18, 0
  %v71 = vsel %vm45, %v19, 0
  %v74 = vsel %vm45, %v20, 0
  %v77 = vsel %vm45, %v21, 0
  %v80 = vsel %vm45, %v22, 0
  %v83 = vsel %vm45, %v23, 0
  %v86 = vsel %vm45, %v24, 0
  %v89 = vsel %vm45, %v25, 0
  %v92 = vsel %vm45, %v26, 0
  %v95 = vsel %vm45, %v27, 0
  %v98 = vsel %vm45, %v28, 0
  %v101 = vsel %vm45, %v29, 0
  %v104 = vsel %vm45, %v30, 0
  %v107 = vsel %vm45, %v31, 0
  %v110 = vsel %vm45, %v32, 0
  %v113 = vsel %vm45, %v33, 0
  %v116 = vsel %vm45, %v34, 0
  %v119 = vsel %vm45, %v35, 0
  %v122 = vsel %vm45, %v36, 0
  %v125 = vsel %vm45, %v37, 0
  %v128 = vsel %vm45, %v38, 0
  %v131 = vsel %vm45, %v39, 0
  %v134 = vsel %vm45, %v40, 0
  %v137 = vsel %vm45, %v41, 0
  %v140 = vsel %vm45, %v42, 0
  %142 = vmatprep.subr.mxu0 0.0
  %143 = vmatpush1.msra.mxu0 %v43
  %144 = vmatprep.subr.mxu0 0.0
  %145 = vmatpush1.msra.mxu0 %v44
  %146 = vmatprep.subr.mxu0 0.0
  %147 = vmatpush1.msra.mxu0 0.0
  %148 = vmatprep.subr.mxu0 0.0
  %149 = vmatpush1.msra.mxu0 0.0
  %150 = vmatprep.subr.mxu0 0.0
  %151 = vmatpush1.msra.mxu0 0.0
  %152 = vmatprep.subr.mxu0 0.0
  %153 = vmatpush1.msra.mxu0 0.0
  %154 = vmatprep.subr.mxu0 0.0
  %155 = vmatpush1.msra.mxu0 0.0
  %156 = vmatprep.subr.mxu0 0.0
  %157 = vmatpush1.msra.mxu0 0.0
  %158 = vmatprep.subr.mxu0 0.0
  %159 = vmatpush1.msra.mxu0 0.0
  %160 = vmatprep.subr.mxu0 0.0
  %161 = vmatpush1.msra.mxu0 0.0
  %162 = vmatprep.subr.mxu0 0.0
  %163 = vmatpush1.msra.mxu0 0.0
  %164 = vmatprep.subr.mxu0 0.0
  %165 = vmatpush1.msra.mxu0 0.0
  %166 = vmatprep.subr.mxu0 0.0
  %167 = vmatpush1.msra.mxu0 0.0
  %168 = vmatprep.subr.mxu0 0.0
  %169 = vmatpush1.msra.mxu0 0.0
  %170 = vmatprep.subr.mxu0 0.0
  %171 = vmatpush1.msra.mxu0 0.0
  %172 = vmatprep.subr.mxu0 0.0
  %173 = vmatpush1.msra.mxu0 0.0
  %174 = vmatprep.subr.mxu0 0.0
  %175 = vmatpush1.msra.mxu0 0.0
  %176 = vmatprep.subr.mxu0 0.0
  %177 = vmatpush1.msra.mxu0 0.0
  %178 = vmatprep.subr.mxu0 0.0
  %179 = vmatpush1.msra.mxu0 0.0
  %180 = vmatprep.subr.mxu0 0.0
  %181 = vmatpush1.msra.mxu0 0.0
  %182 = vmatprep.subr.mxu0 0.0
  %183 = vmatpush1.msra.mxu0 0.0
  %184 = vmatprep.subr.mxu0 0.0
  %185 = vmatpush1.msra.mxu0 0.0
  %186 = vmatprep.subr.mxu0 0.0
  %187 = vmatpush1.msra.mxu0 0.0
  %188 = vmatprep.subr.mxu0 0.0
  %189 = vmatpush1.msra.mxu0 0.0
  %190 = vmatprep.subr.mxu0 0.0
  %191 = vmatpush1.msra.mxu0 0.0
  %192 = vmatprep.subr.mxu0 0.0
  %193 = vmatpush1.msra.mxu0 0.0
  %194 = vmatprep.subr.mxu0 0.0
  %195 = vmatpush1.msra.mxu0 0.0
  %196 = vmatprep.subr.mxu0 0.0
  %197 = vmatpush1.msra.mxu0 0.0
  %198 = vmatprep.subr.mxu0 0.0
  %199 = vmatpush1.msra.mxu0 0.0
  %200 = vmatprep.subr.mxu0 0.0
  %201 = vmatpush1.msra.mxu0 0.0
  %202 = vmatprep.subr.mxu0 0.0
  %203 = vmatpush1.msra.mxu0 0.0
  %204 = vmatprep.subr.mxu0 0.0
  %205 = vmatpush1.msra.mxu0 0.0
  %206 = vmatprep.mubr.f32.mxu0 0.0
  %207 = vmatmul.mubr.f32.gmra.mrb[0].mxu0 %v47
  %v208 = vpop.f32.mrb[0].mxu0
  %v209 = vadd.f32 0.0, %v208
  %v210 = vpop.f32.mrb[0].mxu0
  %211 = vmatprep.mubr.f32.mxu0 0.0
  %212 = vmatmul.mubr.f32.gmra.mrb[0].mxu0 %v50
  %v213 = vpop.f32.mrb[0].mxu0
  %v214 = vadd.f32 0.0, %v213
  %v215 = vpop.f32.mrb[0].mxu0
  %216 = vmatprep.mubr.f32.mxu0 0.0
  %217 = vmatmul.mubr.f32.gmra.mrb[0].mxu0 %v53
  %v218 = vpop.f32.mrb[0].mxu0
  %v219 = vadd.f32 0.0, %v218
  %v220 = vpop.f32.mrb[0].mxu0
  %221 = vmatprep.mubr.f32.mxu0 0.0
  %222 = vmatmul.mubr.f32.gmra.mrb[0].mxu0 %v56
  %v223 = vpop.f32.mrb[0].mxu0
  %v224 = vadd.f32 0.0, %v223
  %v225 = vpop.f32.mrb[0].mxu0
  %226 = vmatprep.mubr.f32.mxu0 0.0
  %227 = vmatmul.mubr.f32.gmra.mrb[0].mxu0 %v59
  %v228 = vpop.f32.mrb[0].mxu0
  %v229 = vadd.f32 0.0, %v228
  %v230 = vpop.f32.mrb[0].mxu0
  %231 = vmatprep.mubr.f32.mxu0 0.0
  %232 = vmatmul.mubr.f32.gmra.mrb[0].mxu0 %v62
  %v233 = vpop.f32.mrb[0].mxu0
  %v234 = vadd.f32 0.0, %v233
  %v235 = vpop.f32.mrb[0].mxu0
  %236 = vmatprep.mubr.f32.mxu0 0.0
  %237 = vmatmul.mubr.f32.gmra.mrb[0].mxu0 %v65
  %v238 = vpop.f32.mrb[0].mxu0
  %v239 = vadd.f32 0.0, %v238
  %v240 = vpop.f32.mrb[0].mxu0
  %241 = vmatprep.mubr.f32.mxu0 0.0
  %242 = vmatmul.mubr.f32.gmra.mrb[0].mxu0 %v68
  %v243 = vpop.f32.mrb[0].mxu0
  %v244 = vadd.f32 0.0, %v243
  %v245 = vpop.f32.mrb[0].mxu0
  %246 = vmatprep.mubr.f32.mxu0 0.0
  %247 = vmatmul.mubr.f32.gmra.mrb[0].mxu0 %v71
  %v248 = vpop.f32.mrb[0].mxu0
  %v249 = vadd.f32 0.0, %v248
  %v250 = vpop.f32.mrb[0].mxu0
  %251 = vmatprep.mubr.f32.mxu0 0.0
  %252 = vmatmul.mubr.f32.gmra.mrb[0].mxu0 %v74
  %v253 = vpop.f32.mrb[0].mxu0
  %v254 = vadd.f32 0.0, %v253
  %v255 = vpop.f32.mrb[0].mxu0
  %256 = vmatprep.mubr.f32.mxu0 0.0
  %257 = vmatmul.mubr.f32.gmra.mrb[0].mxu0 %v77
  %v258 = vpop.f32.mrb[0].mxu0
  %v259 = vadd.f32 0.0, %v258
  %v260 = vpop.f32.mrb[0].mxu0
  %261 = vmatprep.mubr.f32.mxu0 0.0
  %262 = vmatmul.mubr.f32.gmra.mrb[0].mxu0 %v80
  %v263 = vpop.f32.mrb[0].mxu0
  %v264 = vadd.f32 0.0, %v263
  %v265 = vpop.f32.mrb[0].mxu0
  %266 = vmatprep.mubr.f32.mxu0 0.0
  %267 = vmatmul.mubr.f32.gmra.mrb[0].mxu0 %v83
  %v268 = vpop.f32.mrb[0].mxu0
  %v269 = vadd.f32 0.0, %v268
  %v270 = vpop.f32.mrb[0].mxu0
  %271 = vmatprep.mubr.f32.mxu0 0.0
  %272 = vmatmul.mubr.f32.gmra.mrb[0].mxu0 %v86
  %v273 = vpop.f32.mrb[0].mxu0
  %v274 = vadd.f32 0.0, %v273
  %v275 = vpop.f32.mrb[0].mxu0
  %276 = vmatprep.mubr.f32.mxu0 0.0
  %277 = vmatmul.mubr.f32.gmra.mrb[0].mxu0 %v89
  %v278 = vpop.f32.mrb[0].mxu0
  %v279 = vadd.f32 0.0, %v278
  %v280 = vpop.f32.mrb[0].mxu0
  %281 = vmatprep.mubr.f32.mxu0 0.0
  %282 = vmatmul.mubr.f32.gmra.mrb[0].mxu0 %v92
  %v283 = vpop.f32.mrb[0].mxu0
  %v284 = vadd.f32 0.0, %v283
  %v285 = vpop.f32.mrb[0].mxu0
  %286 = vmatprep.mubr.f32.mxu0 0.0
  %287 = vmatmul.mubr.f32.gmra.mrb[0].mxu0 %v95
  %v288 = vpop.f32.mrb[0].mxu0
  %v289 = vadd.f32 0.0, %v288
  %v290 = vpop.f32.mrb[0].mxu0
  %291 = vmatprep.mubr.f32.mxu0 0.0
  %292 = vmatmul.mubr.f32.gmra.mrb[0].mxu0 %v98
  %v293 = vpop.f32.mrb[0].mxu0
  %v294 = vadd.f32 0.0, %v293
  %v295 = vpop.f32.mrb[0].mxu0
  %296 = vmatprep.mubr.f32.mxu0 0.0
  %297 = vmatmul.mubr.f32.gmra.mrb[0].mxu0 %v101
  %v298 = vpop.f32.mrb[0].mxu0
  %v299 = vadd.f32 0.0, %v298
  %v300 = vpop.f32.mrb[0].mxu0
  %301 = vmatprep.mubr.f32.mxu0 0.0
  %302 = vmatmul.mubr.f32.gmra.mrb[0].mxu0 %v104
  %v303 = vpop.f32.mrb[0].mxu0
  %v304 = vadd.f32 0.0, %v303
  %v305 = vpop.f32.mrb[0].mxu0
  %306 = vmatprep.mubr.f32.mxu0 0.0
  %307 = vmatmul.mubr.f32.gmra.mrb[0].mxu0 %v107
  %v308 = vpop.f32.mrb[0].mxu0
  %v309 = vadd.f32 0.0, %v308
  %v310 = vpop.f32.mrb[0].mxu0
  %311 = vmatprep.mubr.f32.mxu0 0.0
  %312 = vmatmul.mubr.f32.gmra.mrb[0].mxu0 %v110
  %v313 = vpop.f32.mrb[0].mxu0
  %v314 = vadd.f32 0.0, %v313
  %v315 = vpop.f32.mrb[0].mxu0
  %316 = vmatprep.mubr.f32.mxu0 0.0
  %317 = vmatmul.mubr.f32.gmra.mrb[0].mxu0 %v113
  %v318 = vpop.f32.mrb[0].mxu0
  %v319 = vadd.f32 0.0, %v318
  %v320 = vpop.f32.mrb[0].mxu0
  %321 = vmatprep.mubr.f32.mxu0 0.0
  %322 = vmatmul.mubr.f32.gmra.mrb[0].mxu0 %v116
  %v323 = vpop.f32.mrb[0].mxu0
  %v324 = vadd.f32 0.0, %v323
  %v325 = vpop.f32.mrb[0].mxu0
  %326 = vmatprep.mubr.f32.mxu0 0.0
  %327 = vmatmul.mubr.f32.gmra.mrb[0].mxu0 %v119
  %v328 = vpop.f32.mrb[0].mxu0
  %v329 = vadd.f32 0.0, %v328
  %v330 = vpop.f32.mrb[0].mxu0
  %331 = vmatprep.mubr.f32.mxu0 0.0
  %332 = vmatmul.mubr.f32.gmra.mrb[0].mxu0 %v122
  %v333 = vpop.f32.mrb[0].mxu0
  %v334 = vadd.f32 0.0, %v333
  %v335 = vpop.f32.mrb[0].mxu0
  %336 = vmatprep.mubr.f32.mxu0 0.0
  %337 = vmatmul.mubr.f32.gmra.mrb[0].mxu0 %v125
  %v338 = vpop.f32.mrb[0].mxu0
  %v339 = vadd.f32 0.0, %v338
  %v340 = vpop.f32.mrb[0].mxu0
  %341 = vmatprep.mubr.f32.mxu0 0.0
  %342 = vmatmul.mubr.f32.gmra.mrb[0].mxu0 %v128
  %v343 = vpop.f32.mrb[0].mxu0
  %v344 = vadd.f32 0.0, %v343
  %v345 = vpop.f32.mrb[0].mxu0
  %346 = vmatprep.mubr.f32.mxu0 0.0
  %347 = vmatmul.mubr.f32.gmra.mrb[0].mxu0 %v131
  %v348 = vpop.f32.mrb[0].mxu0
  %v349 = vadd.f32 0.0, %v348
  %v350 = vpop.f32.mrb[0].mxu0
  %351 = vmatprep.mubr.f32.mxu0 0.0
  %352 = vmatmul.mubr.f32.gmra.mrb[0].mxu0 %v134
  %v353 = vpop.f32.mrb[0].mxu0
  %v354 = vadd.f32 0.0, %v353
  %v355 = vpop.f32.mrb[0].mxu0
  %356 = vmatprep.mubr.f32.mxu0 0.0
  %357 = vmatmul.mubr.f32.gmra.mrb[0].mxu0 %v137
  %v358 = vpop.f32.mrb[0].mxu0
  %v359 = vadd.f32 0.0, %v358
  %v360 = vpop.f32.mrb[0].mxu0
  %361 = vmatprep.mubr.f32.mxu0 0.0
  %362 = vmatmul.mubr.f32.gmra.mrb[0].mxu0 %v140
  %v363 = vpop.f32.mrb[0].mxu0
  %v364 = vadd.f32 0.0, %v363
  %v365 = vpop.f32.mrb[0].mxu0
  %366 = vdwg.mxu0
  %vm367 = vcmask 326656
  %368 = vst.msk [vmem:[%s2] sm:$0xff] %vm367, %v209
  %369 = vst.msk [vmem:[%s2 + $0x8] sm:$0xff] %vm367, %v214
  %370 = vst.msk [vmem:[%s2 + $0x10] sm:$0xff] %vm367, %v219
  %371 = vst.msk [vmem:[%s2 + $0x18] sm:$0xff] %vm367, %v224
  %372 = vst.msk [vmem:[%s2 + $0x20] sm:$0xff] %vm367, %v229
  %373 = vst.msk [vmem:[%s2 + $0x28] sm:$0xff] %vm367, %v234
  %374 = vst.msk [vmem:[%s2 + $0x30] sm:$0xff] %vm367, %v239
  %375 = vst.msk [vmem:[%s2 + $0x38] sm:$0xff] %vm367, %v244
  %376 = vst.msk [vmem:[%s2 + $0x40] sm:$0xff] %vm367, %v249
  %377 = vst.msk [vmem:[%s2 + $0x48] sm:$0xff] %vm367, %v254
  %378 = vst.msk [vmem:[%s2 + $0x50] sm:$0xff] %vm367, %v259
  %379 = vst.msk [vmem:[%s2 + $0x58] sm:$0xff] %vm367, %v264
  %380 = vst.msk [vmem:[%s2 + $0x60] sm:$0xff] %vm367, %v269
  %381 = vst.msk [vmem:[%s2 + $0x68] sm:$0xff] %vm367, %v274
  %382 = vst.msk [vmem:[%s2 + $0x70] sm:$0xff] %vm367, %v279
  %383 = vst.msk [vmem:[%s2 + $0x78] sm:$0xff] %vm367, %v284
  %384 = vst.msk [vmem:[%s2 + $0x80] sm:$0xff] %vm367, %v289
  %385 = vst.msk [vmem:[%s2 + $0x88] sm:$0xff] %vm367, %v294
  %386 = vst.msk [vmem:[%s2 + $0x90] sm:$0xff] %vm367, %v299
  %387 = vst.msk [vmem:[%s2 + $0x98] sm:$0xff] %vm367, %v304
  %388 = vst.msk [vmem:[%s2 + $0xa0] sm:$0xff] %vm367, %v309
  %389 = vst.msk [vmem:[%s2 + $0xa8] sm:$0xff] %vm367, %v314
  %390 = vst.msk [vmem:[%s2 + $0xb0] sm:$0xff] %vm367, %v319
  %391 = vst.msk [vmem:[%s2 + $0xb8] sm:$0xff] %vm367, %v324
  %392 = vst.msk [vmem:[%s2 + $0xc0] sm:$0xff] %vm367, %v329
  %393 = vst.msk [vmem:[%s2 + $0xc8] sm:$0xff] %vm367, %v334
  %394 = vst.msk [vmem:[%s2 + $0xd0] sm:$0xff] %vm367, %v339
  %395 = vst.msk [vmem:[%s2 + $0xd8] sm:$0xff] %vm367, %v344
  %396 = vst.msk [vmem:[%s2 + $0xe0] sm:$0xff] %vm367, %v349
  %397 = vst.msk [vmem:[%s2 + $0xe8] sm:$0xff] %vm367, %v354
  %398 = vst.msk [vmem:[%s2 + $0xf0] sm:$0xff] %vm367, %v359
  %399 = vst.msk [vmem:[%s2 + $0xf8] sm:$0xff] %vm367, %v364
  // Predicated region
  $region10: #{tpu_custom_call.1} parent=0 // pred_check
    _
  $region11: #{tpu_custom_call.1} parent=0 // pred_check_branch
    %401 = sbr.rel (0) target = $region13
  $region12: #{tpu_custom_call.1} parent=0 // pred_region
    _
  $region13: #{tpu_custom_call.1} parent=0 // pred_fallthru
    _
  // Predicated region
  $region14: #{tpu_custom_call.1} parent=0 // pred_check
    _
  $region15: #{tpu_custom_call.1} parent=0 // pred_check_branch
    %403 = sbr.rel (0) target = $region17
  $region16: #{tpu_custom_call.1} parent=0 // pred_region
    _
  $region17: #{tpu_custom_call.1} parent=0 // pred_fallthru
    _

</llo_original>
